<compile_context>
chip_gen: v7x
topology: tpu7x:2x2x1
jax: 0.10.0
libtpu: 0.0.40
codegen_flags: <defaults>
</compile_context>

<pallas_src>
import jax
import jax.numpy as jnp
from jax.experimental import pallas as pl
from jax.experimental.pallas import tpu as pltpu

LANE = 128  # TPU lane width; all feature dims padded to a multiple of this.


def _round_up(x, m):
    return (x + m - 1) // m * m


# ----------------------------------------------------------------------------
# Pallas kernel: fused 6-layer MLP (the Phi() hot path of LinearDKL)
# All feature dims are already padded to 128 by the wrapper.
# ----------------------------------------------------------------------------
def _linear_dkl_mlp_kernel(
    x_ref,
    w1_ref, b1_ref,
    w2_ref, b2_ref,
    w3_ref, b3_ref,
    w4_ref, b4_ref,
    w5_ref, b5_ref,
    w6_ref, b6_ref,
    phi_ref,
):
    mm_dtype = w1_ref.dtype  # matmul operand dtype (f32 or bf16)
    x = x_ref[...]

    # dense_input + tanh   (bias add + activation in f32)
    h = jnp.tanh(
        jnp.dot(x, w1_ref[...], preferred_element_type=jnp.float32) + b1_ref[...]
    )
    # dropout (eval) -> identity
    # dense_intermediate_1 + relu
    h = jnp.maximum(
        jnp.dot(h.astype(mm_dtype), w2_ref[...],
                preferred_element_type=jnp.float32) + b2_ref[...], 0.0
    )
    # dense_intermediate_2 + relu
    h = jnp.maximum(
        jnp.dot(h.astype(mm_dtype), w3_ref[...],
                preferred_element_type=jnp.float32) + b3_ref[...], 0.0
    )
    # dense_intermediate_3 + relu
    h = jnp.maximum(
        jnp.dot(h.astype(mm_dtype), w4_ref[...],
                preferred_element_type=jnp.float32) + b4_ref[...], 0.0
    )
    # dense_intermediate_4 + tanh
    h = jnp.tanh(
        jnp.dot(h.astype(mm_dtype), w5_ref[...],
                preferred_element_type=jnp.float32) + b5_ref[...]
    )
    # dense_intermediate_final (no activation)
    phi = jnp.dot(h.astype(mm_dtype), w6_ref[...],
                  preferred_element_type=jnp.float32) + b6_ref[...]

    phi_ref[...] = phi.astype(phi_ref.dtype)


# ----------------------------------------------------------------------------
# Wrapper: pad to lane-dense shapes, tile the batch, call the kernel.
# ----------------------------------------------------------------------------
def linear_dkl_forward(x, params, sigma, *, tile_n=512, use_bf16_matmul=False):
    """Forward pass of LinearDKL: returns (phi, sigma).

    x      : [N, input_size] float32
    params : dict of weights (in, out) and biases (1, out)
    sigma  : [1, 1] float32 parameter (passed through, as in SigmaLayer)
    """
    n, in_features = x.shape
    hidden = params["w1"].shape[1]
    rank = params["w6"].shape[1]

    # Lane-dense padded feature dims.
    in_pad = _round_up(in_features, LANE)
    hid_pad = _round_up(hidden, LANE)
    rank_pad = _round_up(rank, LANE)

    # Batch tiling: multiple of 8 sublanes, capped at tile_n rows per step.
    n_min = _round_up(n, 8)
    tile_n = max(8, min(_round_up(tile_n, 8), n_min))
    n_pad = _round_up(n, tile_n)

    mm_dtype = jnp.bfloat16 if use_bf16_matmul else jnp.float32

    def pad2(a, rows, cols, dtype=jnp.float32):
        a = a.astype(jnp.float32)
        a = jnp.pad(a, ((0, rows - a.shape[0]), (0, cols - a.shape[1])))
        return a.astype(dtype)

    # Zero-padding is exact: padded input features hit zero weight rows, and
    # padded hidden/rank columns have zero weights + zero bias, so padded
    # activations stay identically zero through tanh/relu and contribute
    # nothing downstream.
    x_p = pad2(x, n_pad, in_pad, mm_dtype)
    w1 = pad2(params["w1"], in_pad, hid_pad, mm_dtype)
    w2 = pad2(params["w2"], hid_pad, hid_pad, mm_dtype)
    w3 = pad2(params["w3"], hid_pad, hid_pad, mm_dtype)
    w4 = pad2(params["w4"], hid_pad, hid_pad, mm_dtype)
    w5 = pad2(params["w5"], hid_pad, hid_pad, mm_dtype)
    w6 = pad2(params["w6"], hid_pad, rank_pad, mm_dtype)
    b1 = pad2(params["b1"], 1, hid_pad)
    b2 = pad2(params["b2"], 1, hid_pad)
    b3 = pad2(params["b3"], 1, hid_pad)
    b4 = pad2(params["b4"], 1, hid_pad)
    b5 = pad2(params["b5"], 1, hid_pad)
    b6 = pad2(params["b6"], 1, rank_pad)

    grid = (n_pad // tile_n,)

    # x / phi stream over the batch grid; weights & biases are grid-invariant
    # (constant index_map) so they are loaded once and stay VMEM-resident.
    x_spec = pl.BlockSpec((tile_n, in_pad), lambda i: (i, 0))
    out_spec = pl.BlockSpec((tile_n, rank_pad), lambda i: (i, 0))

    def w_spec(shape):
        return pl.BlockSpec(shape, lambda i: (0, 0))

    in_specs = [
        x_spec,
        w_spec((in_pad, hid_pad)), w_spec((1, hid_pad)),
        w_spec((hid_pad, hid_pad)), w_spec((1, hid_pad)),
        w_spec((hid_pad, hid_pad)), w_spec((1, hid_pad)),
        w_spec((hid_pad, hid_pad)), w_spec((1, hid_pad)),
        w_spec((hid_pad, hid_pad)), w_spec((1, hid_pad)),
        w_spec((hid_pad, rank_pad)), w_spec((1, rank_pad)),
    ]

    # Advisory cost estimate (padded shapes).
    flops = 2 * n_pad * (in_pad * hid_pad + 4 * hid_pad * hid_pad
                         + hid_pad * rank_pad)
    transcendentals = 2 * n_pad * hid_pad  # two tanh layers
    weight_bytes = 4 * (in_pad * hid_pad + 4 * hid_pad * hid_pad
                        + hid_pad * rank_pad + 5 * hid_pad + rank_pad)
    bytes_accessed = 4 * n_pad * (in_pad + rank_pad) + weight_bytes

    phi_pad = pl.pallas_call(
        _linear_dkl_mlp_kernel,
        out_shape=jax.ShapeDtypeStruct((n_pad, rank_pad), jnp.float32),
        grid=grid,
        in_specs=in_specs,
        out_specs=out_spec,
        compiler_params=pltpu.CompilerParams(
            dimension_semantics=("parallel",),      # v7x: shard batch over 2 TCs
            vmem_limit_bytes=32 * 1024 * 1024,      # safe on v7x's 64 MiB VMEM
        ),
        cost_estimate=pl.CostEstimate(
            flops=int(flops),
            transcendentals=int(transcendentals),
            bytes_accessed=int(bytes_accessed),
        ),
    )(x_p, w1, b1, w2, b2, w3, b3, w4, b4, w5, b5, w6, b6)

    phi = phi_pad[:n, :rank]
    return phi, sigma


# ----------------------------------------------------------------------------
# Deterministic parameter initialization (mimics nn.Linear default init)
# ----------------------------------------------------------------------------
def init_linear_dkl_params(key, rank_of_kernel, sigma_init, input_size):
    hidden = max(rank_of_kernel, 32)
    dims = [
        (input_size, hidden),       # dense_input
        (hidden, hidden),           # dense_intermediate_1
        (hidden, hidden),           # dense_intermediate_2
        (hidden, hidden),           # dense_intermediate_3
        (hidden, hidden),           # dense_intermediate_4
        (hidden, rank_of_kernel),   # dense_intermediate_final
    ]
    params = {}
    for idx, (fan_in, fan_out) in enumerate(dims, start=1):
        key, kw, kb = jax.random.split(key, 3)
        bound = 1.0 / jnp.sqrt(jnp.float32(fan_in))
        params[f"w{idx}"] = jax.random.uniform(
            kw, (fan_in, fan_out), jnp.float32, minval=-bound, maxval=bound
        )
        params[f"b{idx}"] = jax.random.uniform(
            kb, (1, fan_out), jnp.float32, minval=-bound, maxval=bound
        )
    sigma = jnp.full((1, 1), sigma_init, dtype=jnp.float32)
    return params, sigma


# ----------------------------------------------------------------------------
# Pure-JAX reference for a sanity check
# ----------------------------------------------------------------------------
def _reference_forward(x, params, sigma):
    h = jnp.tanh(x @ params["w1"] + params["b1"])
    h = jax.nn.relu(h @ params["w2"] + params["b2"])
    h = jax.nn.relu(h @ params["w3"] + params["b3"])
    h = jax.nn.relu(h @ params["w4"] + params["b4"])
    h = jnp.tanh(h @ params["w5"] + params["b5"])
    phi = h @ params["w6"] + params["b6"]
    return phi, sigma


if __name__ == "__main__":
    # Small shapes consistent with the module.
    rank_of_kernel = 4
    sigma_init = 1.0
    input_size = 16
    batch = 8

    key = jax.random.PRNGKey(0)
    key, kx = jax.random.split(key)
    x = jax.random.normal(kx, (batch, input_size), jnp.float32)

    params, sigma = init_linear_dkl_params(
        key, rank_of_kernel, sigma_init, input_size
    )

    phi, sigma_out = linear_dkl_forward(x, params, sigma)
    phi = jax.block_until_ready(phi)
    sigma_out = jax.block_until_ready(sigma_out)

    # Check against pure-JAX reference.
    phi_ref, _ = _reference_forward(x, params, sigma)
    assert phi.shape == (batch, rank_of_kernel)
    assert sigma_out.shape == (1, 1)
    assert jnp.allclose(phi, phi_ref, atol=1e-5, rtol=1e-5)

    print("KERNEL_OK")
</pallas_src>

<mosaic_0001>
module attributes {stable_mosaic.version = 11 : i64} {
  func.func @_linear_dkl_mlp_kernel(%arg0: i32, %arg1: memref<8x128xf32, #tpu.memory_space<vmem>>, %arg2: memref<128x128xf32, #tpu.memory_space<vmem>>, %arg3: memref<1x128xf32, #tpu.memory_space<vmem>>, %arg4: memref<128x128xf32, #tpu.memory_space<vmem>>, %arg5: memref<1x128xf32, #tpu.memory_space<vmem>>, %arg6: memref<128x128xf32, #tpu.memory_space<vmem>>, %arg7: memref<1x128xf32, #tpu.memory_space<vmem>>, %arg8: memref<128x128xf32, #tpu.memory_space<vmem>>, %arg9: memref<1x128xf32, #tpu.memory_space<vmem>>, %arg10: memref<128x128xf32, #tpu.memory_space<vmem>>, %arg11: memref<1x128xf32, #tpu.memory_space<vmem>>, %arg12: memref<128x128xf32, #tpu.memory_space<vmem>>, %arg13: memref<1x128xf32, #tpu.memory_space<vmem>>, %arg14: memref<8x128xf32, #tpu.memory_space<vmem>>) attributes {dimension_semantics = [#tpu.dimension_semantics<parallel>], iteration_bounds = array<i64: 1>, scalar_prefetch = 0 : i64, scratch_operands = 0 : i64, tpu.core_type = #tpu.core_type<tc>, window_params = [{transform_indices = @transform_0, window_bounds = array<i64: 8, 128>}, {pipeline_mode = #tpu.pipeline_mode<synchronous>, transform_indices = @transform_1, window_bounds = array<i64: 128, 128>}, {pipeline_mode = #tpu.pipeline_mode<synchronous>, transform_indices = @transform_2, window_bounds = array<i64: 1, 128>}, {pipeline_mode = #tpu.pipeline_mode<synchronous>, transform_indices = @transform_3, window_bounds = array<i64: 128, 128>}, {pipeline_mode = #tpu.pipeline_mode<synchronous>, transform_indices = @transform_4, window_bounds = array<i64: 1, 128>}, {pipeline_mode = #tpu.pipeline_mode<synchronous>, transform_indices = @transform_5, window_bounds = array<i64: 128, 128>}, {pipeline_mode = #tpu.pipeline_mode<synchronous>, transform_indices = @transform_6, window_bounds = array<i64: 1, 128>}, {pipeline_mode = #tpu.pipeline_mode<synchronous>, transform_indices = @transform_7, window_bounds = array<i64: 128, 128>}, {pipeline_mode = #tpu.pipeline_mode<synchronous>, transform_indices = @transform_8, window_bounds = array<i64: 1, 128>}, {pipeline_mode = #tpu.pipeline_mode<synchronous>, transform_indices = @transform_9, window_bounds = array<i64: 128, 128>}, {pipeline_mode = #tpu.pipeline_mode<synchronous>, transform_indices = @transform_10, window_bounds = array<i64: 1, 128>}, {pipeline_mode = #tpu.pipeline_mode<synchronous>, transform_indices = @transform_11, window_bounds = array<i64: 128, 128>}, {pipeline_mode = #tpu.pipeline_mode<synchronous>, transform_indices = @transform_12, window_bounds = array<i64: 1, 128>}, {transform_indices = @transform_13, window_bounds = array<i64: 8, 128>}]} {
    %c0 = arith.constant 0 : index
    %c0_0 = arith.constant 0 : index
    %0 = vector.load %arg1[%c0, %c0_0] : memref<8x128xf32, #tpu.memory_space<vmem>>, vector<8x128xf32>
    %c0_1 = arith.constant 0 : index
    %c0_2 = arith.constant 0 : index
    %1 = vector.load %arg2[%c0_1, %c0_2] : memref<128x128xf32, #tpu.memory_space<vmem>>, vector<128x128xf32>
    %cst = arith.constant dense<0.000000e+00> : vector<8x128xf32>
    %2 = tpu.matmul %0, %1, %cst {dimension_numbers = #tpu.dot_dimension_numbers<[1], [0], [0], [1], [0, 0, 1, 1], [], []>} : vector<8x128xf32>, vector<128x128xf32>, vector<8x128xf32> -> vector<8x128xf32>
    %c0_3 = arith.constant 0 : index
    %c0_4 = arith.constant 0 : index
    %3 = vector.load %arg3[%c0_3, %c0_4] : memref<1x128xf32, #tpu.memory_space<vmem>>, vector<1x128xf32>
    %4 = vector.broadcast %3 : vector<1x128xf32> to vector<8x128xf32>
    %5 = arith.addf %2, %4 : vector<8x128xf32>
    %6 = math.tanh %5 : vector<8x128xf32>
    %c0_5 = arith.constant 0 : index
    %c0_6 = arith.constant 0 : index
    %7 = vector.load %arg4[%c0_5, %c0_6] : memref<128x128xf32, #tpu.memory_space<vmem>>, vector<128x128xf32>
    %cst_7 = arith.constant dense<0.000000e+00> : vector<8x128xf32>
    %8 = tpu.matmul %6, %7, %cst_7 {dimension_numbers = #tpu.dot_dimension_numbers<[1], [0], [0], [1], [0, 0, 1, 1], [], []>} : vector<8x128xf32>, vector<128x128xf32>, vector<8x128xf32> -> vector<8x128xf32>
    %c0_8 = arith.constant 0 : index
    %c0_9 = arith.constant 0 : index
    %9 = vector.load %arg5[%c0_8, %c0_9] : memref<1x128xf32, #tpu.memory_space<vmem>>, vector<1x128xf32>
    %10 = vector.broadcast %9 : vector<1x128xf32> to vector<8x128xf32>
    %11 = arith.addf %8, %10 : vector<8x128xf32>
    %cst_10 = arith.constant 0.000000e+00 : f32
    %12 = vector.broadcast %cst_10 : f32 to vector<8x128xf32>
    %13 = arith.maximumf %11, %12 : vector<8x128xf32>
    %c0_11 = arith.constant 0 : index
    %c0_12 = arith.constant 0 : index
    %14 = vector.load %arg6[%c0_11, %c0_12] : memref<128x128xf32, #tpu.memory_space<vmem>>, vector<128x128xf32>
    %cst_13 = arith.constant dense<0.000000e+00> : vector<8x128xf32>
    %15 = tpu.matmul %13, %14, %cst_13 {dimension_numbers = #tpu.dot_dimension_numbers<[1], [0], [0], [1], [0, 0, 1, 1], [], []>} : vector<8x128xf32>, vector<128x128xf32>, vector<8x128xf32> -> vector<8x128xf32>
    %c0_14 = arith.constant 0 : index
    %c0_15 = arith.constant 0 : index
    %16 = vector.load %arg7[%c0_14, %c0_15] : memref<1x128xf32, #tpu.memory_space<vmem>>, vector<1x128xf32>
    %17 = vector.broadcast %16 : vector<1x128xf32> to vector<8x128xf32>
    %18 = arith.addf %15, %17 : vector<8x128xf32>
    %cst_16 = arith.constant 0.000000e+00 : f32
    %19 = vector.broadcast %cst_16 : f32 to vector<8x128xf32>
    %20 = arith.maximumf %18, %19 : vector<8x128xf32>
    %c0_17 = arith.constant 0 : index
    %c0_18 = arith.constant 0 : index
    %21 = vector.load %arg8[%c0_17, %c0_18] : memref<128x128xf32, #tpu.memory_space<vmem>>, vector<128x128xf32>
    %cst_19 = arith.constant dense<0.000000e+00> : vector<8x128xf32>
    %22 = tpu.matmul %20, %21, %cst_19 {dimension_numbers = #tpu.dot_dimension_numbers<[1], [0], [0], [1], [0, 0, 1, 1], [], []>} : vector<8x128xf32>, vector<128x128xf32>, vector<8x128xf32> -> vector<8x128xf32>
    %c0_20 = arith.constant 0 : index
    %c0_21 = arith.constant 0 : index
    %23 = vector.load %arg9[%c0_20, %c0_21] : memref<1x128xf32, #tpu.memory_space<vmem>>, vector<1x128xf32>
    %24 = vector.broadcast %23 : vector<1x128xf32> to vector<8x128xf32>
    %25 = arith.addf %22, %24 : vector<8x128xf32>
    %cst_22 = arith.constant 0.000000e+00 : f32
    %26 = vector.broadcast %cst_22 : f32 to vector<8x128xf32>
    %27 = arith.maximumf %25, %26 : vector<8x128xf32>
    %c0_23 = arith.constant 0 : index
    %c0_24 = arith.constant 0 : index
    %28 = vector.load %arg10[%c0_23, %c0_24] : memref<128x128xf32, #tpu.memory_space<vmem>>, vector<128x128xf32>
    %cst_25 = arith.constant dense<0.000000e+00> : vector<8x128xf32>
    %29 = tpu.matmul %27, %28, %cst_25 {dimension_numbers = #tpu.dot_dimension_numbers<[1], [0], [0], [1], [0, 0, 1, 1], [], []>} : vector<8x128xf32>, vector<128x128xf32>, vector<8x128xf32> -> vector<8x128xf32>
    %c0_26 = arith.constant 0 : index
    %c0_27 = arith.constant 0 : index
    %30 = vector.load %arg11[%c0_26, %c0_27] : memref<1x128xf32, #tpu.memory_space<vmem>>, vector<1x128xf32>
    %31 = vector.broadcast %30 : vector<1x128xf32> to vector<8x128xf32>
    %32 = arith.addf %29, %31 : vector<8x128xf32>
    %33 = math.tanh %32 : vector<8x128xf32>
    %c0_28 = arith.constant 0 : index
    %c0_29 = arith.constant 0 : index
    %34 = vector.load %arg12[%c0_28, %c0_29] : memref<128x128xf32, #tpu.memory_space<vmem>>, vector<128x128xf32>
    %cst_30 = arith.constant dense<0.000000e+00> : vector<8x128xf32>
    %35 = tpu.matmul %33, %34, %cst_30 {dimension_numbers = #tpu.dot_dimension_numbers<[1], [0], [0], [1], [0, 0, 1, 1], [], []>} : vector<8x128xf32>, vector<128x128xf32>, vector<8x128xf32> -> vector<8x128xf32>
    %c0_31 = arith.constant 0 : index
    %c0_32 = arith.constant 0 : index
    %36 = vector.load %arg13[%c0_31, %c0_32] : memref<1x128xf32, #tpu.memory_space<vmem>>, vector<1x128xf32>
    %37 = vector.broadcast %36 : vector<1x128xf32> to vector<8x128xf32>
    %38 = arith.addf %35, %37 : vector<8x128xf32>
    %c0_33 = arith.constant 0 : index
    %c0_34 = arith.constant 0 : index
    %39 = vector.load %arg14[%c0_33, %c0_34] : memref<8x128xf32, #tpu.memory_space<vmem>>, vector<8x128xf32>
    tpu.vector_store %arg14[%c0_33, %c0_34], %38 {strides = array<i32>} : memref<8x128xf32, #tpu.memory_space<vmem>>, vector<8x128xf32>,
    return
  }
  func.func @transform_0(%arg0: i32) -> (i32, i32) {
    %c0_i32 = arith.constant 0 : i32
    %c0_i32_0 = arith.constant 0 : i32
    return %arg0, %c0_i32 : i32, i32
  }
  func.func @transform_1(%arg0: i32) -> (i32, i32) {
    %c0_i32 = arith.constant 0 : i32
    %c0_i32_0 = arith.constant 0 : i32
    %c0_i32_1 = arith.constant 0 : i32
    return %c0_i32, %c0_i32_0 : i32, i32
  }
  func.func @transform_2(%arg0: i32) -> (i32, i32) {
    %c0_i32 = arith.constant 0 : i32
    %c0_i32_0 = arith.constant 0 : i32
    %c0_i32_1 = arith.constant 0 : i32
    return %c0_i32, %c0_i32_0 : i32, i32
  }
  func.func @transform_3(%arg0: i32) -> (i32, i32) {
    %c0_i32 = arith.constant 0 : i32
    %c0_i32_0 = arith.constant 0 : i32
    %c0_i32_1 = arith.constant 0 : i32
    return %c0_i32, %c0_i32_0 : i32, i32
  }
  func.func @transform_4(%arg0: i32) -> (i32, i32) {
    %c0_i32 = arith.constant 0 : i32
    %c0_i32_0 = arith.constant 0 : i32
    %c0_i32_1 = arith.constant 0 : i32
    return %c0_i32, %c0_i32_0 : i32, i32
  }
  func.func @transform_5(%arg0: i32) -> (i32, i32) {
    %c0_i32 = arith.constant 0 : i32
    %c0_i32_0 = arith.constant 0 : i32
    %c0_i32_1 = arith.constant 0 : i32
    return %c0_i32, %c0_i32_0 : i32, i32
  }
  func.func @transform_6(%arg0: i32) -> (i32, i32) {
    %c0_i32 = arith.constant 0 : i32
    %c0_i32_0 = arith.constant 0 : i32
    %c0_i32_1 = arith.constant 0 : i32
    return %c0_i32, %c0_i32_0 : i32, i32
  }
  func.func @transform_7(%arg0: i32) -> (i32, i32) {
    %c0_i32 = arith.constant 0 : i32
    %c0_i32_0 = arith.constant 0 : i32
    %c0_i32_1 = arith.constant 0 : i32
    return %c0_i32, %c0_i32_0 : i32, i32
  }
  func.func @transform_8(%arg0: i32) -> (i32, i32) {
    %c0_i32 = arith.constant 0 : i32
    %c0_i32_0 = arith.constant 0 : i32
    %c0_i32_1 = arith.constant 0 : i32
    return %c0_i32, %c0_i32_0 : i32, i32
  }
  func.func @transform_9(%arg0: i32) -> (i32, i32) {
    %c0_i32 = arith.constant 0 : i32
    %c0_i32_0 = arith.constant 0 : i32
    %c0_i32_1 = arith.constant 0 : i32
    return %c0_i32, %c0_i32_0 : i32, i32
  }
  func.func @transform_10(%arg0: i32) -> (i32, i32) {
    %c0_i32 = arith.constant 0 : i32
    %c0_i32_0 = arith.constant 0 : i32
    %c0_i32_1 = arith.constant 0 : i32
    return %c0_i32, %c0_i32_0 : i32, i32
  }
  func.func @transform_11(%arg0: i32) -> (i32, i32) {
    %c0_i32 = arith.constant 0 : i32
    %c0_i32_0 = arith.constant 0 : i32
    %c0_i32_1 = arith.constant 0 : i32
    return %c0_i32, %c0_i32_0 : i32, i32
  }
  func.func @transform_12(%arg0: i32) -> (i32, i32) {
    %c0_i32 = arith.constant 0 : i32
    %c0_i32_0 = arith.constant 0 : i32
    %c0_i32_1 = arith.constant 0 : i32
    return %c0_i32, %c0_i32_0 : i32, i32
  }
  func.func @transform_13(%arg0: i32) -> (i32, i32) {
    %c0_i32 = arith.constant 0 : i32
    %c0_i32_0 = arith.constant 0 : i32
    return %arg0, %c0_i32 : i32, i32
  }
}

</mosaic_0001>

<llo_original>
// kernel: tpu_custom_call.1
$region0: #{tpu_custom_call.1}
  #allocation0 [shape = 'u32[]', space=smem, size = 0x4, offset = 0x4, fixed_abs, tag = 'smem constant byte address 0x4 - core index']
  #allocation1 [shape = 'u32[144,128]{1,0:T(1,128)}', space=vmem, size = 0x12000, scoped, tag = 'internal scratch']
  %s0 = inlined_call_operand.hbm [shape: f32[8,128], index: 0, kind: input, shape index: {}]
  %s1 = inlined_call_operand.hbm [shape: f32[128,128], index: 1, kind: input, shape index: {}]
  %s2 = inlined_call_operand.vmem [shape: f32[1,128], index: 2, kind: input, shape index: {}]
  %s3 = inlined_call_operand.hbm [shape: f32[128,128], index: 3, kind: input, shape index: {}]
  %s4 = inlined_call_operand.vmem [shape: f32[1,128], index: 4, kind: input, shape index: {}]
  %s5 = inlined_call_operand.hbm [shape: f32[128,128], index: 5, kind: input, shape index: {}]
  %s6 = inlined_call_operand.vmem [shape: f32[1,128], index: 6, kind: input, shape index: {}]
  %s7 = inlined_call_operand.hbm [shape: f32[128,128], index: 7, kind: input, shape index: {}]
  %s8 = inlined_call_operand.vmem [shape: f32[1,128], index: 8, kind: input, shape index: {}]
  %s9 = inlined_call_operand.hbm [shape: f32[128,128], index: 9, kind: input, shape index: {}]
  %s10 = inlined_call_operand.vmem [shape: f32[1,128], index: 10, kind: input, shape index: {}]
  %s11 = inlined_call_operand.hbm [shape: f32[128,128], index: 11, kind: input, shape index: {}]
  %s12 = inlined_call_operand.vmem [shape: f32[1,128], index: 12, kind: input, shape index: {}]
  %s13 = inlined_call_operand.hbm [shape: f32[8,128], index: 13, kind: output, shape index: {}]
  %s14 = sld [smem:[#allocation0]]
  $region90: #{tpu_custom_call.1} parent=0
    _
  %s16 = ssub.s32 1, %s14
  %s17 = scalar_select 0, %s16, %s14
  $region1: #{tpu_custom_call.1} parent=0
    #allocation2 [shape = 'u8[4096]{0}', space=vmem, size = 0x1000, scoped, tag = 'input window, operand 0, single buffered']
    #allocation3 [shape = 's32[1]{0}', space=sflag, size = 0x4, scoped, tag = 'scoped memory for tpu_custom_call.1']
    #allocation4 [shape = 's32[1]{0}', space=sflag, size = 0x4, scoped, tag = 'scoped memory for tpu_custom_call.1']
    #allocation5 [shape = 'u8[65536]{0}', space=vmem, size = 0x10000, scoped, tag = 'input window, operand 1, single buffered']
    #allocation6 [shape = 's32[1]{0}', space=sflag, size = 0x4, scoped, tag = 'scoped memory for tpu_custom_call.1']
    #allocation7 [shape = 'u8[65536]{0}', space=vmem, size = 0x10000, scoped, tag = 'input window, operand 3, single buffered']
    #allocation8 [shape = 'u8[65536]{0}', space=vmem, size = 0x10000, scoped, tag = 'input window, operand 5, single buffered']
    #allocation9 [shape = 's32[1]{0}', space=sflag, size = 0x4, scoped, tag = 'scoped memory for tpu_custom_call.1']
    #allocation10 [shape = 'u8[65536]{0}', space=vmem, size = 0x10000, scoped, tag = 'input window, operand 7, single buffered']
    #allocation11 [shape = 'u8[65536]{0}', space=vmem, size = 0x10000, scoped, tag = 'input window, operand 9, single buffered']
    #allocation12 [shape = 's32[1]{0}', space=sflag, size = 0x4, scoped, tag = 'scoped memory for tpu_custom_call.1']
    #allocation13 [shape = 'u8[65536]{0}', space=vmem, size = 0x10000, scoped, tag = 'input window, operand 11, single buffered']
    #allocation14 [shape = 'u8[4096]{0}', space=vmem, size = 0x1000, scoped, tag = 'output window, operand 0, single buffered']
    %18 = vsyncpa [#allocation3], 0
    %19 = vsyncpa [#allocation6], 0
    %20 = vsyncpa [#allocation9], 0
    %21 = vsyncpa [#allocation12], 0
    %22 = vsyncpa [#allocation4], 0
    // Predicated region
    $region2: #{tpu_custom_call.1} parent=1 // pred_check
      _
    $region3: #{tpu_custom_call.1} parent=1 // pred_check_branch
      %24 = sbr.rel (0) target = $region5
    $region4: #{tpu_custom_call.1} parent=1 // pred_region
      %s26 = ssub.s32 128, 128
      %27 = vsyncadd [#allocation3], %s26
      %s29 = sshll.u32 [#allocation2], 4
      %s30 = int_to_ptr.vmem [resolvable:$true] %s29
      %32 = dma.hbm_to_vmem [thread:$0]  %s0, 128, %s30, [#allocation3]
    $region5: #{tpu_custom_call.1} parent=1 // pred_fallthru
      _
    // Predicated region
    $region6: #{tpu_custom_call.1} parent=1 // pred_check
      _
    $region7: #{tpu_custom_call.1} parent=1 // pred_check_branch
      %34 = sbr.rel (0) target = $region9
    $region8: #{tpu_custom_call.1} parent=1 // pred_region
      %s36 = ssub.s32 2048, 2048
      %37 = vsyncadd [#allocation6], %s36
      %s38 = sshll.u32 [#allocation5], 4
      %s39 = int_to_ptr.vmem [resolvable:$true] %s38
      %44 = dma.hbm_to_vmem [thread:$0]  %s1, 2048, %s39, [#allocation6], 128, 128, 8
    $region9: #{tpu_custom_call.1} parent=1 // pred_fallthru
      _
    // Predicated region
    $region10: #{tpu_custom_call.1} parent=1 // pred_check
      _
    $region11: #{tpu_custom_call.1} parent=1 // pred_check_branch
      %46 = sbr.rel (0) target = $region13
    $region12: #{tpu_custom_call.1} parent=1 // pred_region
      _
    $region13: #{tpu_custom_call.1} parent=1 // pred_fallthru
      _
    // Predicated region
    $region14: #{tpu_custom_call.1} parent=1 // pred_check
      _
    $region15: #{tpu_custom_call.1} parent=1 // pred_check_branch
      %48 = sbr.rel (0) target = $region17
    $region16: #{tpu_custom_call.1} parent=1 // pred_region
      %s50 = ssub.s32 2048, 2048
      %51 = vsyncadd [#allocation6], %s50
      %s52 = sshll.u32 [#allocation7], 4
      %s53 = int_to_ptr.vmem [resolvable:$true] %s52
      %58 = dma.hbm_to_vmem [thread:$0]  %s3, 2048, %s53, [#allocation6], 128, 128, 8
    $region17: #{tpu_custom_call.1} parent=1 // pred_fallthru
      _
    // Predicated region
    $region18: #{tpu_custom_call.1} parent=1 // pred_check
      _
    $region19: #{tpu_custom_call.1} parent=1 // pred_check_branch
      %60 = sbr.rel (0) target = $region21
    $region20: #{tpu_custom_call.1} parent=1 // pred_region
      _
    $region21: #{tpu_custom_call.1} parent=1 // pred_fallthru
      _
    // Predicated region
    $region22: #{tpu_custom_call.1} parent=1 // pred_check
      _
    $region23: #{tpu_custom_call.1} parent=1 // pred_check_branch
      %62 = sbr.rel (0) target = $region25
    $region24: #{tpu_custom_call.1} parent=1 // pred_region
      %s64 = ssub.s32 2048, 2048
      %65 = vsyncadd [#allocation9], %s64
      %s66 = sshll.u32 [#allocation8], 4
      %s67 = int_to_ptr.vmem [resolvable:$true] %s66
      %72 = dma.hbm_to_vmem [thread:$0]  %s5, 2048, %s67, [#allocation9], 128, 128, 8
    $region25: #{tpu_custom_call.1} parent=1 // pred_fallthru
      _
    // Predicated region
    $region26: #{tpu_custom_call.1} parent=1 // pred_check
      _
    $region27: #{tpu_custom_call.1} parent=1 // pred_check_branch
      %74 = sbr.rel (0) target = $region29
    $region28: #{tpu_custom_call.1} parent=1 // pred_region
      _
    $region29: #{tpu_custom_call.1} parent=1 // pred_fallthru
      _
    // Predicated region
    $region30: #{tpu_custom_call.1} parent=1 // pred_check
      _
    $region31: #{tpu_custom_call.1} parent=1 // pred_check_branch
      %76 = sbr.rel (0) target = $region33
    $region32: #{tpu_custom_call.1} parent=1 // pred_region
      %s78 = ssub.s32 2048, 2048
      %79 = vsyncadd [#allocation9], %s78
      %s80 = sshll.u32 [#allocation10], 4
      %s81 = int_to_ptr.vmem [resolvable:$true] %s80
      %86 = dma.hbm_to_vmem [thread:$0]  %s7, 2048, %s81, [#allocation9], 128, 128, 8
    $region33: #{tpu_custom_call.1} parent=1 // pred_fallthru
      _
    // Predicated region
    $region34: #{tpu_custom_call.1} parent=1 // pred_check
      _
    $region35: #{tpu_custom_call.1} parent=1 // pred_check_branch
      %88 = sbr.rel (0) target = $region37
    $region36: #{tpu_custom_call.1} parent=1 // pred_region
      _
    $region37: #{tpu_custom_call.1} parent=1 // pred_fallthru
      _
    // Predicated region
    $region38: #{tpu_custom_call.1} parent=1 // pred_check
      _
    $region39: #{tpu_custom_call.1} parent=1 // pred_check_branch
      %90 = sbr.rel (0) target = $region41
    $region40: #{tpu_custom_call.1} parent=1 // pred_region
      %s92 = ssub.s32 2048, 2048
      %93 = vsyncadd [#allocation12], %s92
      %s94 = sshll.u32 [#allocation11], 4
      %s95 = int_to_ptr.vmem [resolvable:$true] %s94
      %100 = dma.hbm_to_vmem [thread:$0]  %s9, 2048, %s95, [#allocation12], 128, 128, 8
    $region41: #{tpu_custom_call.1} parent=1 // pred_fallthru
      _
    // Predicated region
    $region42: #{tpu_custom_call.1} parent=1 // pred_check
      _
    $region43: #{tpu_custom_call.1} parent=1 // pred_check_branch
      %102 = sbr.rel (0) target = $region45
    $region44: #{tpu_custom_call.1} parent=1 // pred_region
      _
    $region45: #{tpu_custom_call.1} parent=1 // pred_fallthru
      _
    // Predicated region
    $region46: #{tpu_custom_call.1} parent=1 // pred_check
      _
    $region47: #{tpu_custom_call.1} parent=1 // pred_check_branch
      %104 = sbr.rel (0) target = $region49
    $region48: #{tpu_custom_call.1} parent=1 // pred_region
      %s106 = ssub.s32 2048, 2048
      %107 = vsyncadd [#allocation12], %s106
      %s108 = sshll.u32 [#allocation13], 4
      %s109 = int_to_ptr.vmem [resolvable:$true] %s108
      %114 = dma.hbm_to_vmem [thread:$0]  %s11, 2048, %s109, [#allocation12], 128, 128, 8
    $region49: #{tpu_custom_call.1} parent=1 // pred_fallthru
      _
    // Predicated region
    $region50: #{tpu_custom_call.1} parent=1 // pred_check
      _
    $region51: #{tpu_custom_call.1} parent=1 // pred_check_branch
      %116 = sbr.rel (0) target = $region53
    $region52: #{tpu_custom_call.1} parent=1 // pred_region
      _
    $region53: #{tpu_custom_call.1} parent=1 // pred_fallthru
      _
    // Predicated region
    $region54: #{tpu_custom_call.1} parent=1 // pred_check
      _
    $region55: #{tpu_custom_call.1} parent=1 // pred_check_branch
      %118 = sbr.rel (0) target = $region57
    $region56: #{tpu_custom_call.1} parent=1 // pred_region
      %119 = dma.done [#allocation3], 128
    $region57: #{tpu_custom_call.1} parent=1 // pred_fallthru
      _
    // Predicated region
    $region58: #{tpu_custom_call.1} parent=1 // pred_check
      _
    $region59: #{tpu_custom_call.1} parent=1 // pred_check_branch
      %121 = sbr.rel (0) target = $region61
    $region60: #{tpu_custom_call.1} parent=1 // pred_region
      %122 = dma.done [#allocation6], 2048
    $region61: #{tpu_custom_call.1} parent=1 // pred_fallthru
      _
    // Predicated region
    $region62: #{tpu_custom_call.1} parent=1 // pred_check
      _
    $region63: #{tpu_custom_call.1} parent=1 // pred_check_branch
      %124 = sbr.rel (0) target = $region65
    $region64: #{tpu_custom_call.1} parent=1 // pred_region
      %125 = dma.done [#allocation6], 2048
    $region65: #{tpu_custom_call.1} parent=1 // pred_fallthru
      _
    // Predicated region
    $region66: #{tpu_custom_call.1} parent=1 // pred_check
      _
    $region67: #{tpu_custom_call.1} parent=1 // pred_check_branch
      %127 = sbr.rel (0) target = $region69
    $region68: #{tpu_custom_call.1} parent=1 // pred_region
      %128 = dma.done [#allocation9], 2048
    $region69: #{tpu_custom_call.1} parent=1 // pred_fallthru
      _
    // Predicated region
    $region70: #{tpu_custom_call.1} parent=1 // pred_check
      _
    $region71: #{tpu_custom_call.1} parent=1 // pred_check_branch
      %130 = sbr.rel (0) target = $region73
    $region72: #{tpu_custom_call.1} parent=1 // pred_region
      %131 = dma.done [#allocation9], 2048
    $region73: #{tpu_custom_call.1} parent=1 // pred_fallthru
      _
    // Predicated region
    $region74: #{tpu_custom_call.1} parent=1 // pred_check
      _
    $region75: #{tpu_custom_call.1} parent=1 // pred_check_branch
      %133 = sbr.rel (0) target = $region77
    $region76: #{tpu_custom_call.1} parent=1 // pred_region
      %134 = dma.done [#allocation12], 2048
    $region77: #{tpu_custom_call.1} parent=1 // pred_fallthru
      _
    // Predicated region
    $region78: #{tpu_custom_call.1} parent=1 // pred_check
      _
    $region79: #{tpu_custom_call.1} parent=1 // pred_check_branch
      %136 = sbr.rel (0) target = $region81
    $region80: #{tpu_custom_call.1} parent=1 // pred_region
      %137 = dma.done [#allocation12], 2048
    $region81: #{tpu_custom_call.1} parent=1 // pred_fallthru
      _
    %v138 = vld [vmem:[#allocation2] sm:$0xff]
    %v139 = vld [vmem:[#allocation5] sm:$0xff]
    %v140 = vld [vmem:[#allocation5 + $0x8] sm:$0xff]
    %v141 = vld [vmem:[#allocation5 + $0x10] sm:$0xff]
    %v142 = vld [vmem:[#allocation5 + $0x18] sm:$0xff]
    %v143 = vld [vmem:[#allocation5 + $0x20] sm:$0xff]
    %v144 = vld [vmem:[#allocation5 + $0x28] sm:$0xff]
    %v145 = vld [vmem:[#allocation5 + $0x30] sm:$0xff]
    %v146 = vld [vmem:[#allocation5 + $0x38] sm:$0xff]
    %v147 = vld [vmem:[#allocation5 + $0x40] sm:$0xff]
    %v148 = vld [vmem:[#allocation5 + $0x48] sm:$0xff]
    %v149 = vld [vmem:[#allocation5 + $0x50] sm:$0xff]
    %v150 = vld [vmem:[#allocation5 + $0x58] sm:$0xff]
    %v151 = vld [vmem:[#allocation5 + $0x60] sm:$0xff]
    %v152 = vld [vmem:[#allocation5 + $0x68] sm:$0xff]
    %v153 = vld [vmem:[#allocation5 + $0x70] sm:$0xff]
    %v154 = vld [vmem:[#allocation5 + $0x78] sm:$0xff]
    %v155 = vld [vmem:[%s2] sm:$0x1]
    %v157 = vlaneseq
    %v158 = vshrl.u32 %v157, 7
    %v159 = vsub.s32 0, %v158
    %v160 = vrot.slane %v155, %v159
    %162 = vmatprep.subr.mxu0 0.0
    %163 = vmatpush1.msra.mxu0 %v139
    %164 = vmatprep.subr.mxu0 0.0
    %165 = vmatpush1.msra.mxu0 %v140
    %166 = vmatprep.subr.mxu0 0.0
    %167 = vmatpush1.msra.mxu0 %v141
    %168 = vmatprep.subr.mxu0 0.0
    %169 = vmatpush1.msra.mxu0 %v142
    %170 = vmatprep.subr.mxu0 0.0
    %171 = vmatpush1.msra.mxu0 %v143
    %172 = vmatprep.subr.mxu0 0.0
    %173 = vmatpush1.msra.mxu0 %v144
    %174 = vmatprep.subr.mxu0 0.0
    %175 = vmatpush1.msra.mxu0 %v145
    %176 = vmatprep.subr.mxu0 0.0
    %177 = vmatpush1.msra.mxu0 %v146
    %178 = vmatprep.subr.mxu0 0.0
    %179 = vmatpush1.msra.mxu0 %v147
    %180 = vmatprep.subr.mxu0 0.0
    %181 = vmatpush1.msra.mxu0 %v148
    %182 = vmatprep.subr.mxu0 0.0
    %183 = vmatpush1.msra.mxu0 %v149
    %184 = vmatprep.subr.mxu0 0.0
    %185 = vmatpush1.msra.mxu0 %v150
    %186 = vmatprep.subr.mxu0 0.0
    %187 = vmatpush1.msra.mxu0 %v151
    %188 = vmatprep.subr.mxu0 0.0
    %189 = vmatpush1.msra.mxu0 %v152
    %190 = vmatprep.subr.mxu0 0.0
    %191 = vmatpush1.msra.mxu0 %v153
    %192 = vmatprep.subr.mxu0 0.0
    %193 = vmatpush1.msra.mxu0 %v154
    %194 = vmatprep.subr.mxu0 0.0
    %195 = vmatpush1.msra.mxu0 0.0
    %196 = vmatprep.subr.mxu0 0.0
    %197 = vmatpush1.msra.mxu0 0.0
    %198 = vmatprep.subr.mxu0 0.0
    %199 = vmatpush1.msra.mxu0 0.0
    %200 = vmatprep.subr.mxu0 0.0
    %201 = vmatpush1.msra.mxu0 0.0
    %202 = vmatprep.subr.mxu0 0.0
    %203 = vmatpush1.msra.mxu0 0.0
    %204 = vmatprep.subr.mxu0 0.0
    %205 = vmatpush1.msra.mxu0 0.0
    %206 = vmatprep.subr.mxu0 0.0
    %207 = vmatpush1.msra.mxu0 0.0
    %208 = vmatprep.subr.mxu0 0.0
    %209 = vmatpush1.msra.mxu0 0.0
    %210 = vmatprep.subr.mxu0 0.0
    %211 = vmatpush1.msra.mxu0 0.0
    %212 = vmatprep.subr.mxu0 0.0
    %213 = vmatpush1.msra.mxu0 0.0
    %214 = vmatprep.subr.mxu0 0.0
    %215 = vmatpush1.msra.mxu0 0.0
    %216 = vmatprep.subr.mxu0 0.0
    %217 = vmatpush1.msra.mxu0 0.0
    %218 = vmatprep.subr.mxu0 0.0
    %219 = vmatpush1.msra.mxu0 0.0
    %220 = vmatprep.subr.mxu0 0.0
    %221 = vmatpush1.msra.mxu0 0.0
    %222 = vmatprep.subr.mxu0 0.0
    %223 = vmatpush1.msra.mxu0 0.0
    %224 = vmatprep.subr.mxu0 0.0
    %225 = vmatpush1.msra.mxu0 0.0
    %226 = vmatprep.mubr.f32.mxu0 0.0
    %227 = vmatmul.mubr.f32.gmra.mrb[0].mxu0 %v138
    %v228 = vpop.f32.mrb[0].mxu0
    %v229 = vadd.f32 %v160, %v228
    %v230 = vpop.f32.mrb[0].mxu0
    %231 = vdwg.mxu0
    %v232 = vtanh.pop %v229
    %v233 = vld [vmem:[#allocation7] sm:$0xff]
    %v234 = vld [vmem:[#allocation7 + $0x8] sm:$0xff]
    %v235 = vld [vmem:[#allocation7 + $0x10] sm:$0xff]
    %v236 = vld [vmem:[#allocation7 + $0x18] sm:$0xff]
    %v237 = vld [vmem:[#allocation7 + $0x20] sm:$0xff]
    %v238 = vld [vmem:[#allocation7 + $0x28] sm:$0xff]
    %v239 = vld [vmem:[#allocation7 + $0x30] sm:$0xff]
    %v240 = vld [vmem:[#allocation7 + $0x38] sm:$0xff]
    %v241 = vld [vmem:[#allocation7 + $0x40] sm:$0xff]
    %v242 = vld [vmem:[#allocation7 + $0x48] sm:$0xff]
    %v243 = vld [vmem:[#allocation7 + $0x50] sm:$0xff]
    %v244 = vld [vmem:[#allocation7 + $0x58] sm:$0xff]
    %v245 = vld [vmem:[#allocation7 + $0x60] sm:$0xff]
    %v246 = vld [vmem:[#allocation7 + $0x68] sm:$0xff]
    %v247 = vld [vmem:[#allocation7 + $0x70] sm:$0xff]
    %v248 = vld [vmem:[#allocation7 + $0x78] sm:$0xff]
    %v249 = vld [vmem:[%s4] sm:$0x1]
    %v251 = vlaneseq
    %v252 = vshrl.u32 %v251, 7
    %v253 = vsub.s32 0, %v252
    %v254 = vrot.slane %v249, %v253
    %256 = vmatprep.subr.mxu0 0.0
    %257 = vmatpush1.msra.mxu0 %v233
    %258 = vmatprep.subr.mxu0 0.0
    %259 = vmatpush1.msra.mxu0 %v234
    %260 = vmatprep.subr.mxu0 0.0
    %261 = vmatpush1.msra.mxu0 %v235
    %262 = vmatprep.subr.mxu0 0.0
    %263 = vmatpush1.msra.mxu0 %v236
    %264 = vmatprep.subr.mxu0 0.0
    %265 = vmatpush1.msra.mxu0 %v237
    %266 = vmatprep.subr.mxu0 0.0
    %267 = vmatpush1.msra.mxu0 %v238
    %268 = vmatprep.subr.mxu0 0.0
    %269 = vmatpush1.msra.mxu0 %v239
    %270 = vmatprep.subr.mxu0 0.0
    %271 = vmatpush1.msra.mxu0 %v240
    %272 = vmatprep.subr.mxu0 0.0
    %273 = vmatpush1.msra.mxu0 %v241
    %274 = vmatprep.subr.mxu0 0.0
    %275 = vmatpush1.msra.mxu0 %v242
    %276 = vmatprep.subr.mxu0 0.0
    %277 = vmatpush1.msra.mxu0 %v243
    %278 = vmatprep.subr.mxu0 0.0
    %279 = vmatpush1.msra.mxu0 %v244
    %280 = vmatprep.subr.mxu0 0.0
    %281 = vmatpush1.msra.mxu0 %v245
    %282 = vmatprep.subr.mxu0 0.0
    %283 = vmatpush1.msra.mxu0 %v246
    %284 = vmatprep.subr.mxu0 0.0
    %285 = vmatpush1.msra.mxu0 %v247
    %286 = vmatprep.subr.mxu0 0.0
    %287 = vmatpush1.msra.mxu0 %v248
    %288 = vmatprep.subr.mxu0 0.0
    %289 = vmatpush1.msra.mxu0 0.0
    %290 = vmatprep.subr.mxu0 0.0
    %291 = vmatpush1.msra.mxu0 0.0
    %292 = vmatprep.subr.mxu0 0.0
    %293 = vmatpush1.msra.mxu0 0.0
    %294 = vmatprep.subr.mxu0 0.0
    %295 = vmatpush1.msra.mxu0 0.0
    %296 = vmatprep.subr.mxu0 0.0
    %297 = vmatpush1.msra.mxu0 0.0
    %298 = vmatprep.subr.mxu0 0.0
    %299 = vmatpush1.msra.mxu0 0.0
    %300 = vmatprep.subr.mxu0 0.0
    %301 = vmatpush1.msra.mxu0 0.0
    %302 = vmatprep.subr.mxu0 0.0
    %303 = vmatpush1.msra.mxu0 0.0
    %304 = vmatprep.subr.mxu0 0.0
    %305 = vmatpush1.msra.mxu0 0.0
    %306 = vmatprep.subr.mxu0 0.0
    %307 = vmatpush1.msra.mxu0 0.0
    %308 = vmatprep.subr.mxu0 0.0
    %309 = vmatpush1.msra.mxu0 0.0
    %310 = vmatprep.subr.mxu0 0.0
    %311 = vmatpush1.msra.mxu0 0.0
    %312 = vmatprep.subr.mxu0 0.0
    %313 = vmatpush1.msra.mxu0 0.0
    %314 = vmatprep.subr.mxu0 0.0
    %315 = vmatpush1.msra.mxu0 0.0
    %316 = vmatprep.subr.mxu0 0.0
    %317 = vmatpush1.msra.mxu0 0.0
    %318 = vmatprep.subr.mxu0 0.0
    %319 = vmatpush1.msra.mxu0 0.0
    %320 = vmatprep.mubr.f32.mxu0 0.0
    %321 = vmatmul.mubr.f32.gmra.mrb[0].mxu0 %v232
    %v322 = vpop.f32.mrb[0].mxu0
    %v323 = vadd.f32 %v254, %v322
    %v324 = vpop.f32.mrb[0].mxu0
    %325 = vdwg.mxu0
    %v326 = vmax.f32 %v323, 0.0
    %v327 = vld [vmem:[#allocation8] sm:$0xff]
    %v328 = vld [vmem:[#allocation8 + $0x8] sm:$0xff]
    %v329 = vld [vmem:[#allocation8 + $0x10] sm:$0xff]
    %v330 = vld [vmem:[#allocation8 + $0x18] sm:$0xff]
    %v331 = vld [vmem:[#allocation8 + $0x20] sm:$0xff]
    %v332 = vld [vmem:[#allocation8 + $0x28] sm:$0xff]
    %v333 = vld [vmem:[#allocation8 + $0x30] sm:$0xff]
    %v334 = vld [vmem:[#allocation8 + $0x38] sm:$0xff]
    %v335 = vld [vmem:[#allocation8 + $0x40] sm:$0xff]
    %v336 = vld [vmem:[#allocation8 + $0x48] sm:$0xff]
    %v337 = vld [vmem:[#allocation8 + $0x50] sm:$0xff]
    %v338 = vld [vmem:[#allocation8 + $0x58] sm:$0xff]
    %v339 = vld [vmem:[#allocation8 + $0x60] sm:$0xff]
    %v340 = vld [vmem:[#allocation8 + $0x68] sm:$0xff]
    %v341 = vld [vmem:[#allocation8 + $0x70] sm:$0xff]
    %v342 = vld [vmem:[#allocation8 + $0x78] sm:$0xff]
    %v343 = vld [vmem:[%s6] sm:$0x1]
    %v345 = vlaneseq
    %v346 = vshrl.u32 %v345, 7
    %v347 = vsub.s32 0, %v346
    %v348 = vrot.slane %v343, %v347
    %350 = vmatprep.subr.mxu0 0.0
    %351 = vmatpush1.msra.mxu0 %v327
    %352 = vmatprep.subr.mxu0 0.0
    %353 = vmatpush1.msra.mxu0 %v328
    %354 = vmatprep.subr.mxu0 0.0
    %355 = vmatpush1.msra.mxu0 %v329
    %356 = vmatprep.subr.mxu0 0.0
    %357 = vmatpush1.msra.mxu0 %v330
    %358 = vmatprep.subr.mxu0 0.0
    %359 = vmatpush1.msra.mxu0 %v331
    %360 = vmatprep.subr.mxu0 0.0
    %361 = vmatpush1.msra.mxu0 %v332
    %362 = vmatprep.subr.mxu0 0.0
    %363 = vmatpush1.msra.mxu0 %v333
    %364 = vmatprep.subr.mxu0 0.0
    %365 = vmatpush1.msra.mxu0 %v334
    %366 = vmatprep.subr.mxu0 0.0
    %367 = vmatpush1.msra.mxu0 %v335
    %368 = vmatprep.subr.mxu0 0.0
    %369 = vmatpush1.msra.mxu0 %v336
    %370 = vmatprep.subr.mxu0 0.0
    %371 = vmatpush1.msra.mxu0 %v337
    %372 = vmatprep.subr.mxu0 0.0
    %373 = vmatpush1.msra.mxu0 %v338
    %374 = vmatprep.subr.mxu0 0.0
    %375 = vmatpush1.msra.mxu0 %v339
    %376 = vmatprep.subr.mxu0 0.0
    %377 = vmatpush1.msra.mxu0 %v340
    %378 = vmatprep.subr.mxu0 0.0
    %379 = vmatpush1.msra.mxu0 %v341
    %380 = vmatprep.subr.mxu0 0.0
    %381 = vmatpush1.msra.mxu0 %v342
    %382 = vmatprep.subr.mxu0 0.0
    %383 = vmatpush1.msra.mxu0 0.0
    %384 = vmatprep.subr.mxu0 0.0
    %385 = vmatpush1.msra.mxu0 0.0
    %386 = vmatprep.subr.mxu0 0.0
    %387 = vmatpush1.msra.mxu0 0.0
    %388 = vmatprep.subr.mxu0 0.0
    %389 = vmatpush1.msra.mxu0 0.0
    %390 = vmatprep.subr.mxu0 0.0
    %391 = vmatpush1.msra.mxu0 0.0
    %392 = vmatprep.subr.mxu0 0.0
    %393 = vmatpush1.msra.mxu0 0.0
    %394 = vmatprep.subr.mxu0 0.0
    %395 = vmatpush1.msra.mxu0 0.0
    %396 = vmatprep.subr.mxu0 0.0
    %397 = vmatpush1.msra.mxu0 0.0
    %398 = vmatprep.subr.mxu0 0.0
    %399 = vmatpush1.msra.mxu0 0.0
    %400 = vmatprep.subr.mxu0 0.0
    %401 = vmatpush1.msra.mxu0 0.0
    %402 = vmatprep.subr.mxu0 0.0
    %403 = vmatpush1.msra.mxu0 0.0
    %404 = vmatprep.subr.mxu0 0.0
    %405 = vmatpush1.msra.mxu0 0.0
    %406 = vmatprep.subr.mxu0 0.0
    %407 = vmatpush1.msra.mxu0 0.0
    %408 = vmatprep.subr.mxu0 0.0
    %409 = vmatpush1.msra.mxu0 0.0
    %410 = vmatprep.subr.mxu0 0.0
    %411 = vmatpush1.msra.mxu0 0.0
    %412 = vmatprep.subr.mxu0 0.0
    %413 = vmatpush1.msra.mxu0 0.0
    %414 = vmatprep.mubr.f32.mxu0 0.0
    %415 = vmatmul.mubr.f32.gmra.mrb[0].mxu0 %v326
    %v416 = vpop.f32.mrb[0].mxu0
    %v417 = vadd.f32 %v348, %v416
    %v418 = vpop.f32.mrb[0].mxu0
    %419 = vdwg.mxu0
    %v420 = vmax.f32 %v417, 0.0
    %v421 = vld [vmem:[#allocation10] sm:$0xff]
    %v422 = vld [vmem:[#allocation10 + $0x8] sm:$0xff]
    %v423 = vld [vmem:[#allocation10 + $0x10] sm:$0xff]
    %v424 = vld [vmem:[#allocation10 + $0x18] sm:$0xff]
    %v425 = vld [vmem:[#allocation10 + $0x20] sm:$0xff]
    %v426 = vld [vmem:[#allocation10 + $0x28] sm:$0xff]
    %v427 = vld [vmem:[#allocation10 + $0x30] sm:$0xff]
    %v428 = vld [vmem:[#allocation10 + $0x38] sm:$0xff]
    %v429 = vld [vmem:[#allocation10 + $0x40] sm:$0xff]
    %v430 = vld [vmem:[#allocation10 + $0x48] sm:$0xff]
    %v431 = vld [vmem:[#allocation10 + $0x50] sm:$0xff]
    %v432 = vld [vmem:[#allocation10 + $0x58] sm:$0xff]
    %v433 = vld [vmem:[#allocation10 + $0x60] sm:$0xff]
    %v434 = vld [vmem:[#allocation10 + $0x68] sm:$0xff]
    %v435 = vld [vmem:[#allocation10 + $0x70] sm:$0xff]
    %v436 = vld [vmem:[#allocation10 + $0x78] sm:$0xff]
    %v437 = vld [vmem:[%s8] sm:$0x1]
    %v439 = vlaneseq
    %v440 = vshrl.u32 %v439, 7
    %v441 = vsub.s32 0, %v440
    %v442 = vrot.slane %v437, %v441
    %444 = vmatprep.subr.mxu0 0.0
    %445 = vmatpush1.msra.mxu0 %v421
    %446 = vmatprep.subr.mxu0 0.0
    %447 = vmatpush1.msra.mxu0 %v422
    %448 = vmatprep.subr.mxu0 0.0
    %449 = vmatpush1.msra.mxu0 %v423
    %450 = vmatprep.subr.mxu0 0.0
    %451 = vmatpush1.msra.mxu0 %v424
    %452 = vmatprep.subr.mxu0 0.0
    %453 = vmatpush1.msra.mxu0 %v425
    %454 = vmatprep.subr.mxu0 0.0
    %455 = vmatpush1.msra.mxu0 %v426
    %456 = vmatprep.subr.mxu0 0.0
    %457 = vmatpush1.msra.mxu0 %v427
    %458 = vmatprep.subr.mxu0 0.0
    %459 = vmatpush1.msra.mxu0 %v428
    %460 = vmatprep.subr.mxu0 0.0
    %461 = vmatpush1.msra.mxu0 %v429
    %462 = vmatprep.subr.mxu0 0.0
    %463 = vmatpush1.msra.mxu0 %v430
    %464 = vmatprep.subr.mxu0 0.0
    %465 = vmatpush1.msra.mxu0 %v431
    %466 = vmatprep.subr.mxu0 0.0
    %467 = vmatpush1.msra.mxu0 %v432
    %468 = vmatprep.subr.mxu0 0.0
    %469 = vmatpush1.msra.mxu0 %v433
    %470 = vmatprep.subr.mxu0 0.0
    %471 = vmatpush1.msra.mxu0 %v434
    %472 = vmatprep.subr.mxu0 0.0
    %473 = vmatpush1.msra.mxu0 %v435
    %474 = vmatprep.subr.mxu0 0.0
    %475 = vmatpush1.msra.mxu0 %v436
    %476 = vmatprep.subr.mxu0 0.0
    %477 = vmatpush1.msra.mxu0 0.0
    %478 = vmatprep.subr.mxu0 0.0
    %479 = vmatpush1.msra.mxu0 0.0
    %480 = vmatprep.subr.mxu0 0.0
    %481 = vmatpush1.msra.mxu0 0.0
    %482 = vmatprep.subr.mxu0 0.0
    %483 = vmatpush1.msra.mxu0 0.0
    %484 = vmatprep.subr.mxu0 0.0
    %485 = vmatpush1.msra.mxu0 0.0
    %486 = vmatprep.subr.mxu0 0.0
    %487 = vmatpush1.msra.mxu0 0.0
    %488 = vmatprep.subr.mxu0 0.0
    %489 = vmatpush1.msra.mxu0 0.0
    %490 = vmatprep.subr.mxu0 0.0
    %491 = vmatpush1.msra.mxu0 0.0
    %492 = vmatprep.subr.mxu0 0.0
    %493 = vmatpush1.msra.mxu0 0.0
    %494 = vmatprep.subr.mxu0 0.0
    %495 = vmatpush1.msra.mxu0 0.0
    %496 = vmatprep.subr.mxu0 0.0
    %497 = vmatpush1.msra.mxu0 0.0
    %498 = vmatprep.subr.mxu0 0.0
    %499 = vmatpush1.msra.mxu0 0.0
    %500 = vmatprep.subr.mxu0 0.0
    %501 = vmatpush1.msra.mxu0 0.0
    %502 = vmatprep.subr.mxu0 0.0
    %503 = vmatpush1.msra.mxu0 0.0
    %504 = vmatprep.subr.mxu0 0.0
    %505 = vmatpush1.msra.mxu0 0.0
    %506 = vmatprep.subr.mxu0 0.0
    %507 = vmatpush1.msra.mxu0 0.0
    %508 = vmatprep.mubr.f32.mxu0 0.0
    %509 = vmatmul.mubr.f32.gmra.mrb[0].mxu0 %v420
    %v510 = vpop.f32.mrb[0].mxu0
    %v511 = vadd.f32 %v442, %v510
    %v512 = vpop.f32.mrb[0].mxu0
    %513 = vdwg.mxu0
    %v514 = vmax.f32 %v511, 0.0
    %v515 = vld [vmem:[#allocation11] sm:$0xff]
    %v516 = vld [vmem:[#allocation11 + $0x8] sm:$0xff]
    %v517 = vld [vmem:[#allocation11 + $0x10] sm:$0xff]
    %v518 = vld [vmem:[#allocation11 + $0x18] sm:$0xff]
    %v519 = vld [vmem:[#allocation11 + $0x20] sm:$0xff]
    %v520 = vld [vmem:[#allocation11 + $0x28] sm:$0xff]
    %v521 = vld [vmem:[#allocation11 + $0x30] sm:$0xff]
    %v522 = vld [vmem:[#allocation11 + $0x38] sm:$0xff]
    %v523 = vld [vmem:[#allocation11 + $0x40] sm:$0xff]
    %v524 = vld [vmem:[#allocation11 + $0x48] sm:$0xff]
    %v525 = vld [vmem:[#allocation11 + $0x50] sm:$0xff]
    %v526 = vld [vmem:[#allocation11 + $0x58] sm:$0xff]
    %v527 = vld [vmem:[#allocation11 + $0x60] sm:$0xff]
    %v528 = vld [vmem:[#allocation11 + $0x68] sm:$0xff]
    %v529 = vld [vmem:[#allocation11 + $0x70] sm:$0xff]
    %v530 = vld [vmem:[#allocation11 + $0x78] sm:$0xff]
    %v531 = vld [vmem:[%s10] sm:$0x1]
    %v533 = vlaneseq
    %v534 = vshrl.u32 %v533, 7
    %v535 = vsub.s32 0, %v534
    %v536 = vrot.slane %v531, %v535
    %538 = vmatprep.subr.mxu0 0.0
    %539 = vmatpush1.msra.mxu0 %v515
    %540 = vmatprep.subr.mxu0 0.0
    %541 = vmatpush1.msra.mxu0 %v516
    %542 = vmatprep.subr.mxu0 0.0
    %543 = vmatpush1.msra.mxu0 %v517
    %544 = vmatprep.subr.mxu0 0.0
    %545 = vmatpush1.msra.mxu0 %v518
    %546 = vmatprep.subr.mxu0 0.0
    %547 = vmatpush1.msra.mxu0 %v519
    %548 = vmatprep.subr.mxu0 0.0
    %549 = vmatpush1.msra.mxu0 %v520
    %550 = vmatprep.subr.mxu0 0.0
    %551 = vmatpush1.msra.mxu0 %v521
    %552 = vmatprep.subr.mxu0 0.0
    %553 = vmatpush1.msra.mxu0 %v522
    %554 = vmatprep.subr.mxu0 0.0
    %555 = vmatpush1.msra.mxu0 %v523
    %556 = vmatprep.subr.mxu0 0.0
    %557 = vmatpush1.msra.mxu0 %v524
    %558 = vmatprep.subr.mxu0 0.0
    %559 = vmatpush1.msra.mxu0 %v525
    %560 = vmatprep.subr.mxu0 0.0
    %561 = vmatpush1.msra.mxu0 %v526
    %562 = vmatprep.subr.mxu0 0.0
    %563 = vmatpush1.msra.mxu0 %v527
    %564 = vmatprep.subr.mxu0 0.0
    %565 = vmatpush1.msra.mxu0 %v528
    %566 = vmatprep.subr.mxu0 0.0
    %567 = vmatpush1.msra.mxu0 %v529
    %568 = vmatprep.subr.mxu0 0.0
    %569 = vmatpush1.msra.mxu0 %v530
    %570 = vmatprep.subr.mxu0 0.0
    %571 = vmatpush1.msra.mxu0 0.0
    %572 = vmatprep.subr.mxu0 0.0
    %573 = vmatpush1.msra.mxu0 0.0
    %574 = vmatprep.subr.mxu0 0.0
    %575 = vmatpush1.msra.mxu0 0.0
    %576 = vmatprep.subr.mxu0 0.0
    %577 = vmatpush1.msra.mxu0 0.0
    %578 = vmatprep.subr.mxu0 0.0
    %579 = vmatpush1.msra.mxu0 0.0
    %580 = vmatprep.subr.mxu0 0.0
    %581 = vmatpush1.msra.mxu0 0.0
    %582 = vmatprep.subr.mxu0 0.0
    %583 = vmatpush1.msra.mxu0 0.0
    %584 = vmatprep.subr.mxu0 0.0
    %585 = vmatpush1.msra.mxu0 0.0
    %586 = vmatprep.subr.mxu0 0.0
    %587 = vmatpush1.msra.mxu0 0.0
    %588 = vmatprep.subr.mxu0 0.0
    %589 = vmatpush1.msra.mxu0 0.0
    %590 = vmatprep.subr.mxu0 0.0
    %591 = vmatpush1.msra.mxu0 0.0
    %592 = vmatprep.subr.mxu0 0.0
    %593 = vmatpush1.msra.mxu0 0.0
    %594 = vmatprep.subr.mxu0 0.0
    %595 = vmatpush1.msra.mxu0 0.0
    %596 = vmatprep.subr.mxu0 0.0
    %597 = vmatpush1.msra.mxu0 0.0
    %598 = vmatprep.subr.mxu0 0.0
    %599 = vmatpush1.msra.mxu0 0.0
    %600 = vmatprep.subr.mxu0 0.0
    %601 = vmatpush1.msra.mxu0 0.0
    %602 = vmatprep.mubr.f32.mxu0 0.0
    %603 = vmatmul.mubr.f32.gmra.mrb[0].mxu0 %v514
    %v604 = vpop.f32.mrb[0].mxu0
    %v605 = vadd.f32 %v536, %v604
    %v606 = vpop.f32.mrb[0].mxu0
    %607 = vdwg.mxu0
    %v608 = vtanh.pop %v605
    %v609 = vld [vmem:[#allocation13] sm:$0xff]
    %v610 = vld [vmem:[#allocation13 + $0x8] sm:$0xff]
    %v611 = vld [vmem:[#allocation13 + $0x10] sm:$0xff]
    %v612 = vld [vmem:[#allocation13 + $0x18] sm:$0xff]
    %v613 = vld [vmem:[#allocation13 + $0x20] sm:$0xff]
    %v614 = vld [vmem:[#allocation13 + $0x28] sm:$0xff]
    %v615 = vld [vmem:[#allocation13 + $0x30] sm:$0xff]
    %v616 = vld [vmem:[#allocation13 + $0x38] sm:$0xff]
    %v617 = vld [vmem:[#allocation13 + $0x40] sm:$0xff]
    %v618 = vld [vmem:[#allocation13 + $0x48] sm:$0xff]
    %v619 = vld [vmem:[#allocation13 + $0x50] sm:$0xff]
    %v620 = vld [vmem:[#allocation13 + $0x58] sm:$0xff]
    %v621 = vld [vmem:[#allocation13 + $0x60] sm:$0xff]
    %v622 = vld [vmem:[#allocation13 + $0x68] sm:$0xff]
    %v623 = vld [vmem:[#allocation13 + $0x70] sm:$0xff]
    %v624 = vld [vmem:[#allocation13 + $0x78] sm:$0xff]
    %v625 = vld [vmem:[%s12] sm:$0x1]
    %v627 = vlaneseq
    %v628 = vshrl.u32 %v627, 7
    %v629 = vsub.s32 0, %v628
    %v630 = vrot.slane %v625, %v629
    %632 = vmatprep.subr.mxu0 0.0
    %633 = vmatpush1.msra.mxu0 %v609
    %634 = vmatprep.subr.mxu0 0.0
    %635 = vmatpush1.msra.mxu0 %v610
    %636 = vmatprep.subr.mxu0 0.0
    %637 = vmatpush1.msra.mxu0 %v611
    %638 = vmatprep.subr.mxu0 0.0
    %639 = vmatpush1.msra.mxu0 %v612
    %640 = vmatprep.subr.mxu0 0.0
    %641 = vmatpush1.msra.mxu0 %v613
    %642 = vmatprep.subr.mxu0 0.0
    %643 = vmatpush1.msra.mxu0 %v614
    %644 = vmatprep.subr.mxu0 0.0
    %645 = vmatpush1.msra.mxu0 %v615
    %646 = vmatprep.subr.mxu0 0.0
    %647 = vmatpush1.msra.mxu0 %v616
    %648 = vmatprep.subr.mxu0 0.0
    %649 = vmatpush1.msra.mxu0 %v617
    %650 = vmatprep.subr.mxu0 0.0
    %651 = vmatpush1.msra.mxu0 %v618
    %652 = vmatprep.subr.mxu0 0.0
    %653 = vmatpush1.msra.mxu0 %v619
    %654 = vmatprep.subr.mxu0 0.0
    %655 = vmatpush1.msra.mxu0 %v620
    %656 = vmatprep.subr.mxu0 0.0
    %657 = vmatpush1.msra.mxu0 %v621
    %658 = vmatprep.subr.mxu0 0.0
    %659 = vmatpush1.msra.mxu0 %v622
    %660 = vmatprep.subr.mxu0 0.0
    %661 = vmatpush1.msra.mxu0 %v623
    %662 = vmatprep.subr.mxu0 0.0
    %663 = vmatpush1.msra.mxu0 %v624
    %664 = vmatprep.subr.mxu0 0.0
    %665 = vmatpush1.msra.mxu0 0.0
    %666 = vmatprep.subr.mxu0 0.0
    %667 = vmatpush1.msra.mxu0 0.0
    %668 = vmatprep.subr.mxu0 0.0
    %669 = vmatpush1.msra.mxu0 0.0
    %670 = vmatprep.subr.mxu0 0.0
    %671 = vmatpush1.msra.mxu0 0.0
    %672 = vmatprep.subr.mxu0 0.0
    %673 = vmatpush1.msra.mxu0 0.0
    %674 = vmatprep.subr.mxu0 0.0
    %675 = vmatpush1.msra.mxu0 0.0
    %676 = vmatprep.subr.mxu0 0.0
    %677 = vmatpush1.msra.mxu0 0.0
    %678 = vmatprep.subr.mxu0 0.0
    %679 = vmatpush1.msra.mxu0 0.0
    %680 = vmatprep.subr.mxu0 0.0
    %681 = vmatpush1.msra.mxu0 0.0
    %682 = vmatprep.subr.mxu0 0.0
    %683 = vmatpush1.msra.mxu0 0.0
    %684 = vmatprep.subr.mxu0 0.0
    %685 = vmatpush1.msra.mxu0 0.0
    %686 = vmatprep.subr.mxu0 0.0
    %687 = vmatpush1.msra.mxu0 0.0
    %688 = vmatprep.subr.mxu0 0.0
    %689 = vmatpush1.msra.mxu0 0.0
    %690 = vmatprep.subr.mxu0 0.0
    %691 = vmatpush1.msra.mxu0 0.0
    %692 = vmatprep.subr.mxu0 0.0
    %693 = vmatpush1.msra.mxu0 0.0
    %694 = vmatprep.subr.mxu0 0.0
    %695 = vmatpush1.msra.mxu0 0.0
    %696 = vmatprep.mubr.f32.mxu0 0.0
    %697 = vmatmul.mubr.f32.gmra.mrb[0].mxu0 %v608
    %v698 = vpop.f32.mrb[0].mxu0
    %v699 = vadd.f32 %v630, %v698
    %v700 = vpop.f32.mrb[0].mxu0
    %701 = vdwg.mxu0
    %702 = vst [vmem:[#allocation14] sm:$0xff] %v699
    // Predicated region
    $region82: #{tpu_custom_call.1} parent=1 // pred_check
      _
    $region83: #{tpu_custom_call.1} parent=1 // pred_check_branch
      %704 = sbr.rel (0) target = $region85
    $region84: #{tpu_custom_call.1} parent=1 // pred_region
      %s706 = ssub.s32 128, 128
      %707 = vsyncadd [#allocation4], %s706
      %s709 = sshll.u32 [#allocation14], 4
      %s710 = int_to_ptr.vmem [resolvable:$true] %s709
      %712 = dma.vmem_to_hbm [thread:$0]  %s710, 128, %s13, [#allocation4]
    $region85: #{tpu_custom_call.1} parent=1 // pred_fallthru
      _
    // Predicated region
    $region86: #{tpu_custom_call.1} parent=1 // pred_check
      _
    $region87: #{tpu_custom_call.1} parent=1 // pred_check_branch
      %714 = sbr.rel (0) target = $region89
    $region88: #{tpu_custom_call.1} parent=1 // pred_region
      %715 = dma.done [#allocation4], 128
    $region89: #{tpu_custom_call.1} parent=1 // pred_fallthru
      _
    %716 = vsyncpa [#allocation3], 1
    %717 = vsyncpa [#allocation6], 1
    %718 = vsyncpa [#allocation9], 1
    %719 = vsyncpa [#allocation12], 1
    %720 = vsyncpa [#allocation4], 1

</llo_original>
